<compile_context>
chip_gen: v7x
topology: tpu7x:2x2x1
jax: 0.10.0
libtpu: 0.0.40
codegen_flags: <defaults>
</compile_context>

<pallas_src>
import functools

import jax
import jax.numpy as jnp
from jax.experimental import pallas as pl
from jax.experimental.pallas import tpu as pltpu


def same_padding(W, F, S, rate=1):
    out_rows = (W + S - 1) // S
    effective_k_row = (F - 1) * rate + 1
    p = max(0, (out_rows - 1) * S + effective_k_row - W)
    return int(p / 2.0)


def _a_eam_kernel(x_ref, ws_ref, b_ref, o_ref, stk_ref, *, K, P, W, C, Bt):
    # x_ref  : (1, Bt, C, W)   unpadded input block (Bt batch elements)
    # ws_ref : (C+1, K*C)      rows 0..C-1: conv2 taps; row C: folded conv1 gate
    # b_ref  : (C+1, 1)        [b2 ; folded b1]
    # o_ref  : (1, C, Bt*W)    lane-dense output slab
    # stk_ref: (K*C, Bt*W)     VMEM scratch: stacked, shifted matmul operand
    #
    # Build the stacked operand: row block k holds x shifted by (k - P) with
    # 'same'-padding zeros, batch folded onto lanes.  Zero once per step, then
    # write the valid windows (all slice bounds are static Python ints).
    stk_ref[...] = jnp.zeros_like(stk_ref)
    for b in range(Bt):
        xb = x_ref[0, b]                                   # (C, W)
        for k in range(K):
            s = k - P                                      # shift amount
            rows = slice(k * C, (k + 1) * C)
            if s >= 0:
                if W - s > 0:
                    stk_ref[rows, b * W: b * W + (W - s)] = xb[:, s:]
            else:
                if W + s > 0:
                    stk_ref[rows, b * W - s: (b + 1) * W] = xb[:, :W + s]

    stk = stk_ref[...]                                      # (K*C, Bt*W)
    # Single MXU matmul: conv2 (all K taps) + conv1 gate row; bias added once.
    res = jnp.dot(ws_ref[...], stk,
                  preferred_element_type=jnp.float32) + b_ref[...]
    y = jnp.maximum(res[:C, :], 0.0)                        # ReLU(conv2)
    t = jax.nn.sigmoid(res[C:C + 1, :])                     # sigmoid(BN(conv1))
    x_flat = stk[P * C:(P + 1) * C, :]                      # unshifted x (tap P)
    o_ref[0] = (y * t + x_flat).astype(o_ref.dtype)


def _pick_batch_tile(B, W, target_lanes=1024):
    """Fold enough batch elements onto lanes to be lane-dense, but keep >=2
    grid blocks when possible so v7x's two TensorCores both get work."""
    bt = max(1, min(B, -(-target_lanes // max(W, 1))))
    if B >= 2:
        bt = min(bt, max(1, B // 2))
    while B % bt:
        bt -= 1
    return bt


def a_eam_forward(x, params, kernel_size, batch_tile=None):
    """x: (B, C, W) float32 (PyTorch NCW layout).  Returns (B, C, W)."""
    B, C, W = x.shape
    K = int(kernel_size)
    # The PyTorch module itself only works for odd K: same_padding floors
    # (K-1)/2, so even K yields a conv2 output of width W-1 and the residual
    # add fails.  Enforce the well-defined case.
    assert K % 2 == 1, "A_EAM requires odd kernel_size"
    P = same_padding(W, K, 1)
    eps = 1e-5

    w1 = params["w1"]                     # (1, C, 1)
    b1 = params["b1"]                     # (1,)
    gamma = params["gamma"]               # (1,)
    beta = params["beta"]                 # (1,)
    r_mean = params["running_mean"]       # (1,)
    r_var = params["running_var"]         # (1,)
    w2 = params["w2"]                     # (C, C, K)
    b2 = params["b2"]                     # (C,)

    # Fold eval-mode BatchNorm1d(1) into the 1x1 conv (exact affine fold).
    a = gamma / jnp.sqrt(r_var + eps)                         # (1,)
    w1_eff = (w1[:, :, 0] * a).astype(jnp.float32)            # (1, C)
    b1_eff = (a * (b1 - r_mean) + beta).astype(jnp.float32)   # (1,)

    # Stacked weight: rows 0..C-1 are conv2 with column index k*C + ci;
    # row C is the gate (conv1 is 1x1 -> it lives only on the centre tap P).
    w2_kc = jnp.transpose(w2, (0, 2, 1)).reshape(C, K * C).astype(jnp.float32)
    gate_row = jnp.zeros((1, K * C), jnp.float32)
    gate_row = gate_row.at[:, P * C:(P + 1) * C].set(w1_eff)
    ws = jnp.concatenate([w2_kc, gate_row], axis=0)           # (C+1, K*C)
    bvec = jnp.concatenate([b2.astype(jnp.float32), b1_eff]).reshape(C + 1, 1)
    # TODO(synk): optional bf16 cast of ws / x would hit v6e MXU peak but
    # loosens the 1e-5 tolerance; kept f32 to match the reference exactly.

    Bt = int(batch_tile) if batch_tile else _pick_batch_tile(B, W)
    G = B // Bt
    x4 = x.reshape(G, Bt, C, W)           # free reshape; no padded HBM copy

    # VMEM budget: in/out blocks and weights are double-buffered by the
    # pipeline; scratch is single.  Clamp so the config also fits v7x (64 MiB).
    per_step = (Bt * C * W + C * Bt * W) * 4
    weights = ((C + 1) * (K * C) + (C + 1)) * 4
    scratch = (K * C) * (Bt * W) * 4
    vmem_limit = int(min(64 * 2 ** 20,
                         max(8 * 2 ** 20,
                             2 * (per_step + weights) + scratch + (2 << 20))))

    kernel = functools.partial(_a_eam_kernel, K=K, P=P, W=W, C=C, Bt=Bt)
    out = pl.pallas_call(
        kernel,
        out_shape=jax.ShapeDtypeStruct((G, C, Bt * W), x.dtype),
        grid_spec=pltpu.PrefetchScalarGridSpec(
            num_scalar_prefetch=0,
            grid=(G,),                                   # batch groups
            in_specs=[
                pl.BlockSpec((1, Bt, C, W), lambda g: (g, 0, 0, 0)),
                # Weights / bias are grid-constant (index_map always 0): the
                # pipeline skips their re-DMA after the first step.
                pl.BlockSpec((C + 1, K * C), lambda g: (0, 0)),
                pl.BlockSpec((C + 1, 1), lambda g: (0, 0)),
            ],
            out_specs=pl.BlockSpec((1, C, Bt * W), lambda g: (g, 0, 0)),
            scratch_shapes=[pltpu.VMEM((K * C, Bt * W), jnp.float32)],
        ),
        compiler_params=pltpu.CompilerParams(
            dimension_semantics=("parallel",),
            vmem_limit_bytes=vmem_limit),
    )(x4, ws, bvec)

    # Un-fold batch from the lane axis (layout plumbing; for Bt == 1 this is a
    # pure reshape).
    return out.reshape(G, C, Bt, W).transpose(0, 2, 1, 3).reshape(B, C, W)


def a_eam_reference(x, params, kernel_size):
    """Pure-JAX reference mirroring the PyTorch forward (eval-mode BN)."""
    B, C, W = x.shape
    K = kernel_size
    P = same_padding(W, K, 1)
    eps = 1e-5

    # conv1 (1x1)
    t = jnp.einsum("bcw,oc->bow", x, params["w1"][:, :, 0]) + params["b1"][None, :, None]
    # batchnorm (eval) + sigmoid
    t = (t - params["running_mean"][None, :, None]) / jnp.sqrt(
        params["running_var"][None, :, None] + eps)
    t = t * params["gamma"][None, :, None] + params["beta"][None, :, None]
    t = jax.nn.sigmoid(t)
    # conv2 ('same')
    xp = jnp.pad(x, ((0, 0), (0, 0), (P, P)))
    y = jnp.zeros((B, C, W), jnp.float32)
    for k in range(K):
        y = y + jnp.einsum("oik,biw->bow", params["w2"][:, :, k:k + 1],
                           xp[:, :, k:k + W])
    y = jax.nn.relu(y + params["b2"][None, :, None])
    return y * t + x


if __name__ == "__main__":
    # Small shapes consistent with the module: batch=2, nb_filter(C)=4,
    # width(W)=16, kernel_size=3.
    B, C, W, K = 2, 4, 16, 3

    key = jax.random.PRNGKey(0)
    k_x, k_w1, k_b1, k_w2, k_b2 = jax.random.split(key, 5)

    x = jax.random.normal(k_x, (B, C, W), dtype=jnp.float32)

    params = {
        "w1": 0.3 * jax.random.normal(k_w1, (1, C, 1), dtype=jnp.float32),
        "b1": 0.1 * jax.random.normal(k_b1, (1,), dtype=jnp.float32),
        "gamma": jnp.ones((1,), jnp.float32),          # BatchNorm1d(1) defaults
        "beta": jnp.zeros((1,), jnp.float32),
        "running_mean": jnp.zeros((1,), jnp.float32),
        "running_var": jnp.ones((1,), jnp.float32),
        "w2": 0.3 * jax.random.normal(k_w2, (C, C, K), dtype=jnp.float32),
        "b2": 0.1 * jax.random.normal(k_b2, (C,), dtype=jnp.float32),
    }

    out = a_eam_forward(x, params, K)
    out = jax.block_until_ready(out)

    ref = a_eam_reference(x, params, K)
    assert out.shape == (B, C, W)
    assert jnp.allclose(out, ref, atol=1e-5, rtol=1e-5), (
        float(jnp.max(jnp.abs(out - ref))))

    print("KERNEL_OK")
</pallas_src>

<mosaic_0001>
module attributes {stable_mosaic.version = 11 : i64} {
  func.func @_a_eam_kernel(%arg0: i32, %arg1: memref<1x1x4x16xf32, #tpu.memory_space<vmem>>, %arg2: memref<5x12xf32, #tpu.memory_space<vmem>>, %arg3: memref<5x1xf32, #tpu.memory_space<vmem>>, %arg4: memref<1x4x16xf32, #tpu.memory_space<vmem>>, %arg5: memref<12x16xf32, #tpu.memory_space<vmem>>) attributes {dimension_semantics = [#tpu.dimension_semantics<parallel>], iteration_bounds = array<i64: 2>, scalar_prefetch = 0 : i64, scratch_operands = 1 : i64, tpu.core_type = #tpu.core_type<tc>, window_params = [{transform_indices = @transform_0, window_bounds = array<i64: 1, 1, 4, 16>}, {pipeline_mode = #tpu.pipeline_mode<synchronous>, transform_indices = @transform_1, window_bounds = array<i64: 5, 12>}, {pipeline_mode = #tpu.pipeline_mode<synchronous>, transform_indices = @transform_2, window_bounds = array<i64: 5, 1>}, {transform_indices = @transform_3, window_bounds = array<i64: 1, 4, 16>}]} {
    %cst = arith.constant 0.000000e+00 : f32
    %0 = vector.broadcast %cst : f32 to vector<12x16xf32>
    %c0 = arith.constant 0 : index
    %c0_0 = arith.constant 0 : index
    %1 = vector.load %arg5[%c0, %c0_0] : memref<12x16xf32, #tpu.memory_space<vmem>>, vector<12x16xf32>
    tpu.vector_store %arg5[%c0, %c0_0], %0 {strides = array<i32>} : memref<12x16xf32, #tpu.memory_space<vmem>>, vector<12x16xf32>,
    %c0_1 = arith.constant 0 : index
    %c0_2 = arith.constant 0 : index
    %c0_3 = arith.constant 0 : index
    %c0_4 = arith.constant 0 : index
    %2 = vector.load %arg1[%c0_1, %c0_2, %c0_3, %c0_4] : memref<1x1x4x16xf32, #tpu.memory_space<vmem>>, vector<1x1x4x16xf32>
    %3 = vector.shape_cast %2 : vector<1x1x4x16xf32> to vector<4x16xf32>
    %4 = vector.extract_strided_slice %3 {offsets = [0, 0], sizes = [4, 15], strides = [1, 1]} : vector<4x16xf32> to vector<4x15xf32>
    %c0_5 = arith.constant 0 : index
    %c1 = arith.constant 1 : index
    %5 = vector.load %arg5[%c0_5, %c1] : memref<12x16xf32, #tpu.memory_space<vmem>>, vector<4x15xf32>
    tpu.vector_store %arg5[%c0_5, %c1], %4 {strides = array<i32>} : memref<12x16xf32, #tpu.memory_space<vmem>>, vector<4x15xf32>,
    %c4 = arith.constant 4 : index
    %c0_6 = arith.constant 0 : index
    %6 = vector.load %arg5[%c4, %c0_6] : memref<12x16xf32, #tpu.memory_space<vmem>>, vector<4x16xf32>
    tpu.vector_store %arg5[%c4, %c0_6], %3 {strides = array<i32>} : memref<12x16xf32, #tpu.memory_space<vmem>>, vector<4x16xf32>,
    %7 = vector.extract_strided_slice %3 {offsets = [0, 1], sizes = [4, 15], strides = [1, 1]} : vector<4x16xf32> to vector<4x15xf32>
    %c8 = arith.constant 8 : index
    %c0_7 = arith.constant 0 : index
    %8 = vector.load %arg5[%c8, %c0_7] : memref<12x16xf32, #tpu.memory_space<vmem>>, vector<4x15xf32>
    tpu.vector_store %arg5[%c8, %c0_7], %7 {strides = array<i32>} : memref<12x16xf32, #tpu.memory_space<vmem>>, vector<4x15xf32>,
    %c0_8 = arith.constant 0 : index
    %c0_9 = arith.constant 0 : index
    %9 = vector.load %arg5[%c0_8, %c0_9] : memref<12x16xf32, #tpu.memory_space<vmem>>, vector<12x16xf32>
    %c0_10 = arith.constant 0 : index
    %c0_11 = arith.constant 0 : index
    %10 = vector.load %arg2[%c0_10, %c0_11] : memref<5x12xf32, #tpu.memory_space<vmem>>, vector<5x12xf32>
    %cst_12 = arith.constant dense<0.000000e+00> : vector<5x16xf32>
    %11 = tpu.matmul %10, %9, %cst_12 {dimension_numbers = #tpu.dot_dimension_numbers<[1], [0], [0], [1], [0, 0, 1, 1], [], []>} : vector<5x12xf32>, vector<12x16xf32>, vector<5x16xf32> -> vector<5x16xf32>
    %c0_13 = arith.constant 0 : index
    %c0_14 = arith.constant 0 : index
    %12 = vector.load %arg3[%c0_13, %c0_14] : memref<5x1xf32, #tpu.memory_space<vmem>>, vector<5x1xf32>
    %13 = vector.broadcast %12 : vector<5x1xf32> to vector<5x16xf32>
    %14 = arith.addf %11, %13 : vector<5x16xf32>
    %15 = vector.extract_strided_slice %14 {offsets = [0, 0], sizes = [4, 16], strides = [1, 1]} : vector<5x16xf32> to vector<4x16xf32>
    %cst_15 = arith.constant 0.000000e+00 : f32
    %16 = vector.broadcast %cst_15 : f32 to vector<4x16xf32>
    %17 = arith.maximumf %15, %16 : vector<4x16xf32>
    %18 = vector.extract_strided_slice %14 {offsets = [4, 0], sizes = [1, 16], strides = [1, 1]} : vector<5x16xf32> to vector<1x16xf32>
    %19 = arith.negf %18 : vector<1x16xf32>
    %20 = math.exp %19 : vector<1x16xf32>
    %cst_16 = arith.constant 1.000000e+00 : f32
    %21 = vector.broadcast %cst_16 : f32 to vector<1x16xf32>
    %22 = arith.addf %21, %20 : vector<1x16xf32>
    %23 = arith.divf %21, %22 : vector<1x16xf32>
    %24 = vector.extract_strided_slice %9 {offsets = [4, 0], sizes = [4, 16], strides = [1, 1]} : vector<12x16xf32> to vector<4x16xf32>
    %25 = vector.broadcast %23 : vector<1x16xf32> to vector<4x16xf32>
    %26 = arith.mulf %17, %25 : vector<4x16xf32>
    %27 = arith.addf %26, %24 : vector<4x16xf32>
    %c0_17 = arith.constant 0 : index
    %c0_18 = arith.constant 0 : index
    %c0_19 = arith.constant 0 : index
    %28 = vector.load %arg4[%c0_17, %c0_18, %c0_19] : memref<1x4x16xf32, #tpu.memory_space<vmem>>, vector<1x4x16xf32>
    %29 = vector.shape_cast %28 : vector<1x4x16xf32> to vector<4x16xf32>
    %30 = vector.shape_cast %27 : vector<4x16xf32> to vector<1x4x16xf32>
    tpu.vector_store %arg4[%c0_17, %c0_18, %c0_19], %30 {strides = array<i32>} : memref<1x4x16xf32, #tpu.memory_space<vmem>>, vector<1x4x16xf32>,
    return
  }
  func.func @transform_0(%arg0: i32) -> (i32, i32, i32, i32) {
    %c0_i32 = arith.constant 0 : i32
    %c0_i32_0 = arith.constant 0 : i32
    %c0_i32_1 = arith.constant 0 : i32
    %c0_i32_2 = arith.constant 0 : i32
    return %arg0, %c0_i32, %c0_i32_0, %c0_i32_1 : i32, i32, i32, i32
  }
  func.func @transform_1(%arg0: i32) -> (i32, i32) {
    %c0_i32 = arith.constant 0 : i32
    %c0_i32_0 = arith.constant 0 : i32
    %c0_i32_1 = arith.constant 0 : i32
    return %c0_i32, %c0_i32_0 : i32, i32
  }
  func.func @transform_2(%arg0: i32) -> (i32, i32) {
    %c0_i32 = arith.constant 0 : i32
    %c0_i32_0 = arith.constant 0 : i32
    %c0_i32_1 = arith.constant 0 : i32
    return %c0_i32, %c0_i32_0 : i32, i32
  }
  func.func @transform_3(%arg0: i32) -> (i32, i32, i32) {
    %c0_i32 = arith.constant 0 : i32
    %c0_i32_0 = arith.constant 0 : i32
    %c0_i32_1 = arith.constant 0 : i32
    return %arg0, %c0_i32, %c0_i32_0 : i32, i32, i32
  }
}

</mosaic_0001>

<llo_original>
// kernel: tpu_custom_call.1
$region0: #{tpu_custom_call.1}
  #allocation0 [shape = 'u32[]', space=smem, size = 0x4, offset = 0x4, fixed_abs, tag = 'smem constant byte address 0x4 - core index']
  #allocation1 [shape = 'u32[144,128]{1,0:T(1,128)}', space=vmem, size = 0x12000, scoped, tag = 'internal scratch']
  #allocation2 [shape = 'f32[12,16]{1,0:T(8,128)}', space=vmem, size = 0x2000, scoped, tag = 'scratch operand']
  %s0 = inlined_call_operand.vmem [shape: f32[2,1,4,16], index: 0, kind: input, shape index: {}]
  %s1 = inlined_call_operand.hbm [shape: f32[5,12], index: 1, kind: input, shape index: {}]
  %s2 = inlined_call_operand.vmem [shape: f32[5,1], index: 2, kind: input, shape index: {}]
  %s3 = inlined_call_operand.hbm [shape: f32[2,4,16], index: 3, kind: output, shape index: {}]
  %s4 = sld [smem:[#allocation0]]
  $region49: #{tpu_custom_call.1} parent=0
    _
  %s6 = ssub.s32 1, %s4
  %s7 = scalar_select 0, %s6, %s4
  $region1: #{tpu_custom_call.1} parent=0
    #allocation3 [shape = 'u8[4096]{0}', space=vmem, size = 0x1000, scoped, tag = 'input window, operand 1, single buffered']
    #allocation4 [shape = 's32[2]{0}', space=sflag, size = 0x8, scoped, tag = 'scoped memory for tpu_custom_call.1']
    #allocation5 [shape = 's32[2]{0}', space=sflag, size = 0x8, scoped, tag = 'scoped memory for tpu_custom_call.1']
    #allocation6 [shape = 'u8[4096]{0}', space=vmem, size = 0x1000, scoped, tag = 'output window, operand 0']
    %8 = vsyncpa [#allocation4], 0
    %9 = vsyncpa [#allocation5], 0
    %s10 = scalar_lea.sflag [#allocation5], 1
    %11 = vsyncpa %s10, 0
    loop: start=0, step=1, limit=4
    $region2: #{tpu_custom_call.1} parent=1 // loop_pre_header
      _
    $region3: #{tpu_custom_call.1} parent=1 // loop_header
      %s13 = sphi 0, %s17
      %p14 = scmp.ge.s32.totalorder %s13, 4
      %s23 = sphi 0, %s25
      %s26 = sphi 0, %s23
      %s27 = sphi 0, %s26
      %s43 = sphi 0, %s27
      %s47 = sphi 0, %s47
      %s49 = sphi 0, %s47
      %s50 = sphi 0, %s49
      %s64 = sphi 0, %s50
      %s68 = sphi 0, %s68
      %s70 = sphi 0, %s68
      %s71 = sphi 0, %s70
      %s85 = sphi 0, %s71
      %s91 = sphi 0, %s93
      %s94 = sphi 0, %s91
      %s95 = sphi 0, %s94
      %s111 = sphi 0, %s95
    $region4: #{tpu_custom_call.1} parent=1 // loop_header_branch
      %16 = sbr.rel (%p14) target = $region8
    $region5: #{tpu_custom_call.1} parent=1 // loop_body
      %s18 = ssub.s32 %s13, 1
      %s19 = ssub.s32 %s13, 2
      %s20 = sadd.s32 %s13, 1
      %s21 = ssub.s32 %s13, %s20
      %p22 = scmp.eq.s32.totalorder %s21, 0
      %s24 = sadd.s32 %s23, 1
      %s25 = scalar_select %p22, %s23, %s24
      %p28 = pneg %p22
      %p29 = scmp.eq.s32.totalorder %s13, 1
      %p30 = por %p28, %p29
      %p31 = scmp.ne.s32.totalorder %s23, %s26
      %p32 = scmp.eq.s32.totalorder %s13, 0
      %p33 = por %p31, %p32
      %p34 = scmp.ne.s32.totalorder %s23, %s26
      %p35 = scmp.eq.s32.totalorder %s18, 1
      %p36 = por %p34, %p35
      %p37 = scmp.ne.s32.totalorder %s26, %s27
      %p38 = scmp.eq.s32.totalorder %s18, 0
      %p39 = por %p37, %p38
      %p40 = scmp.ne.s32.totalorder %s26, %s27
      %p41 = scmp.eq.s32.totalorder %s19, 1
      %p42 = por %p40, %p41
      %p44 = scmp.ne.s32.totalorder %s27, %s43
      %p45 = scmp.eq.s32.totalorder %s19, 0
      %p46 = por %p44, %p45
      %s48 = sadd.s32 %s47, 1
      %p51 = scmp.eq.s32.totalorder %s13, 1
      %p52 = scmp.ne.s32.totalorder %s47, %s49
      %p53 = scmp.eq.s32.totalorder %s13, 0
      %p54 = por %p52, %p53
      %p55 = scmp.ne.s32.totalorder %s47, %s49
      %p56 = scmp.eq.s32.totalorder %s18, 1
      %p57 = por %p55, %p56
      %p58 = scmp.ne.s32.totalorder %s49, %s50
      %p59 = scmp.eq.s32.totalorder %s18, 0
      %p60 = por %p58, %p59
      %p61 = scmp.ne.s32.totalorder %s49, %s50
      %p62 = scmp.eq.s32.totalorder %s19, 1
      %p63 = por %p61, %p62
      %p65 = scmp.ne.s32.totalorder %s50, %s64
      %p66 = scmp.eq.s32.totalorder %s19, 0
      %p67 = por %p65, %p66
      %s69 = sadd.s32 %s68, 1
      %p72 = scmp.eq.s32.totalorder %s13, 1
      %p73 = scmp.ne.s32.totalorder %s68, %s70
      %p74 = scmp.eq.s32.totalorder %s13, 0
      %p75 = por %p73, %p74
      %p76 = scmp.ne.s32.totalorder %s68, %s70
      %p77 = scmp.eq.s32.totalorder %s18, 1
      %p78 = por %p76, %p77
      %p79 = scmp.ne.s32.totalorder %s70, %s71
      %p80 = scmp.eq.s32.totalorder %s18, 0
      %p81 = por %p79, %p80
      %p82 = scmp.ne.s32.totalorder %s70, %s71
      %p83 = scmp.eq.s32.totalorder %s19, 1
      %p84 = por %p82, %p83
      %p86 = scmp.ne.s32.totalorder %s71, %s85
      %p87 = scmp.eq.s32.totalorder %s19, 0
      %p88 = por %p86, %p87
      %s89 = ssub.s32 %s13, %s20
      %p90 = scmp.eq.s32.totalorder %s89, 0
      %s92 = sadd.s32 %s91, 1
      %s93 = scalar_select %p90, %s91, %s92
      %p96 = pneg %p90
      %p97 = scmp.eq.s32.totalorder %s13, 1
      %p98 = por %p96, %p97
      %p99 = scmp.ne.s32.totalorder %s91, %s94
      %p100 = scmp.eq.s32.totalorder %s13, 0
      %p101 = por %p99, %p100
      %p102 = scmp.ne.s32.totalorder %s91, %s94
      %p103 = scmp.eq.s32.totalorder %s18, 1
      %p104 = por %p102, %p103
      %p105 = scmp.ne.s32.totalorder %s94, %s95
      %p106 = scmp.eq.s32.totalorder %s18, 0
      %p107 = por %p105, %p106
      %p108 = scmp.ne.s32.totalorder %s94, %s95
      %p109 = scmp.eq.s32.totalorder %s19, 1
      %p110 = por %p108, %p109
      %p112 = scmp.ne.s32.totalorder %s95, %s111
      %p113 = scmp.eq.s32.totalorder %s19, 0
      %p114 = por %p112, %p113
      %p115 = scmp.le.s32.totalorder 1, %s13
      %p116 = scmp.lt.s32.totalorder %s13, 3
      %p117 = pnand %p115, %p116
      %p118 = pneg %p117
      // Predicated region
      $region9: #{tpu_custom_call.1} parent=5 // pred_check
        _
      $region10: #{tpu_custom_call.1} parent=5 // pred_check_branch
        %120 = sbr.rel (%p117) target = $region12
      $region11: #{tpu_custom_call.1} parent=5 // pred_region
        %s121 = ssub.s32 %s13, 1
        // Predicated region
        $region13: #{tpu_custom_call.1} parent=11 // pred_check
          %p122 = pneg %p60
        $region14: #{tpu_custom_call.1} parent=11 // pred_check_branch
          %124 = sbr.rel (%p122) target = $region16
        $region15: #{tpu_custom_call.1} parent=11 // pred_region
          %s126 = ssub.s32 128, 128
          %127 = vsyncadd [#allocation4], %s126
          %s129 = sshll.u32 [#allocation3], 4
          %s130 = int_to_ptr.vmem [resolvable:$true] %s129
          %132 = dma.hbm_to_vmem [thread:$0]  %s1, 128, %s130, [#allocation4]
        $region16: #{tpu_custom_call.1} parent=11 // pred_fallthru
          _
        // Predicated region
        $region17: #{tpu_custom_call.1} parent=11 // pred_check
          %p133 = pneg %p81
        $region18: #{tpu_custom_call.1} parent=11 // pred_check_branch
          %135 = sbr.rel (%p133) target = $region20
        $region19: #{tpu_custom_call.1} parent=11 // pred_region
          _
        $region20: #{tpu_custom_call.1} parent=11 // pred_fallthru
          _
      $region12: #{tpu_custom_call.1} parent=5 // pred_fallthru
        _
      %p136 = scmp.lt.s32.totalorder %s13, 2
      // Predicated region
      $region21: #{tpu_custom_call.1} parent=5 // pred_check
        %p137 = pneg %p136
      $region22: #{tpu_custom_call.1} parent=5 // pred_check_branch
        %139 = sbr.rel (%p137) target = $region24
      $region23: #{tpu_custom_call.1} parent=5 // pred_region
        // Predicated region
        $region25: #{tpu_custom_call.1} parent=23 // pred_check
          %p140 = pneg %p33
        $region26: #{tpu_custom_call.1} parent=23 // pred_check_branch
          %142 = sbr.rel (%p140) target = $region28
        $region27: #{tpu_custom_call.1} parent=23 // pred_region
          %p143 = scmp.lt.s32.totalorder %s13, 1
          %s144 = scalar_select %p143, %s13, 1
          %s145 = smul.addr %s144, 4
          %s146 = scalar_lea.vmem %s0, %s145
        $region28: #{tpu_custom_call.1} parent=23 // pred_fallthru
          _
      $region24: #{tpu_custom_call.1} parent=5 // pred_fallthru
        _
      %p147 = scmp.le.s32.totalorder 1, %s13
      %p148 = scmp.lt.s32.totalorder %s13, 3
      %p149 = pnand %p147, %p148
      %p150 = pneg %p149
      // Predicated region
      $region29: #{tpu_custom_call.1} parent=5 // pred_check
        _
      $region30: #{tpu_custom_call.1} parent=5 // pred_check_branch
        %152 = sbr.rel (%p149) target = $region32
      $region31: #{tpu_custom_call.1} parent=5 // pred_region
        %s153 = ssub.s32 %s13, 1
        // Predicated region
        $region33: #{tpu_custom_call.1} parent=31 // pred_check
          %p154 = pneg %p60
        $region34: #{tpu_custom_call.1} parent=31 // pred_check_branch
          %156 = sbr.rel (%p154) target = $region36
        $region35: #{tpu_custom_call.1} parent=31 // pred_region
          %157 = dma.done [#allocation4], 128
        $region36: #{tpu_custom_call.1} parent=31 // pred_fallthru
          _
        %p158 = scmp.lt.s32.totalorder %s18, 1
        %s159 = scalar_select %p158, %s18, 1
        %s160 = smul.addr %s159, 4
        %s161 = scalar_lea.vmem %s0, %s160
        %p162 = pneg %p39
        %p163 = pneg %p36
        %p164 = pneg %p60
        %p165 = pneg %p57
        %p166 = pneg %p81
        %p167 = pneg %p78
        %p168 = pneg %p107
        %p169 = pneg %p104
        %s170 = sand.u32 %s94, 1
        %s171 = scalar_lea.sflag [#allocation5], %s170
        %s172 = sand.u32 %s94, 1
        %s173 = smul.addr %s172, 4
        %s174 = scalar_lea.vmem [#allocation6], %s173
        %p175 = scmp.lt.s32.totalorder %s18, 1
        %s176 = scalar_select %p175, %s18, 1
        %s177 = smul.addr %s176, 4
        %s178 = scalar_lea.vmem %s0, %s177
        %vm179 = vcmask 130048
        %180 = vst.msk [vmem:[#allocation2] sm:$0xff] %vm179, 0.0
        %vm181 = vcmask 125952
        %182 = vst.msk [vmem:[#allocation2 + $0x8] sm:$0xf] %vm181, 0.0
        %v183 = vld [vmem:[%s178] sm:$0xf]
        %185 = vrot.lane.b32.xlu0 %v183, 1
        %v186 = vpop.permute.xlu0 %185
        %vm188 = vcmask 125960
        %189 = vst.msk [vmem:[#allocation2] sm:$0xf] %vm188, %v186
        %190 = vst.msk [vmem:[#allocation2 + $0x4] sm:$0xf] %vm181, %v183
        %191 = vrot.lane.b32.xlu0 %v183, 127
        %v192 = vpop.permute.xlu0 %191
        %vm194 = vcmask 117760
        %195 = vst.msk [vmem:[#allocation2 + $0x8] sm:$0xf] %vm194, %v192
        %v196 = vld [vmem:[#allocation2] sm:$0xff]
        %v197 = vld [vmem:[#allocation2 + $0x8] sm:$0xf]
        %v198 = vld [vmem:[#allocation3] sm:$0x1f]
        %v199 = vld [vmem:[%s2] sm:$0x1f]
        %201 = vset.pattern.permute.xlu0 0
        %202 = vperm.xlu0 %201, %v199
        %v203 = vpop.permute.xlu0 %202
        %vm205 = vcmask 97280
        %v207 = vsel %vm205, %v198, 0
        %vm209 = vcmask 1043456
        %v211 = vsel %vm209, %v197, 0
        %213 = vmatprep.subr.mxu0 0.0
        %214 = vmatpush1.msra.mxu0 %v196
        %215 = vmatprep.subr.mxu0 0.0
        %216 = vmatpush1.msra.mxu0 %v211
        %217 = vmatprep.subr.mxu0 0.0
        %218 = vmatpush1.msra.mxu0 0.0
        %219 = vmatprep.subr.mxu0 0.0
        %220 = vmatpush1.msra.mxu0 0.0
        %221 = vmatprep.subr.mxu0 0.0
        %222 = vmatpush1.msra.mxu0 0.0
        %223 = vmatprep.subr.mxu0 0.0
        %224 = vmatpush1.msra.mxu0 0.0
        %225 = vmatprep.subr.mxu0 0.0
        %226 = vmatpush1.msra.mxu0 0.0
        %227 = vmatprep.subr.mxu0 0.0
        %228 = vmatpush1.msra.mxu0 0.0
        %229 = vmatprep.subr.mxu0 0.0
        %230 = vmatpush1.msra.mxu0 0.0
        %231 = vmatprep.subr.mxu0 0.0
        %232 = vmatpush1.msra.mxu0 0.0
        %233 = vmatprep.subr.mxu0 0.0
        %234 = vmatpush1.msra.mxu0 0.0
        %235 = vmatprep.subr.mxu0 0.0
        %236 = vmatpush1.msra.mxu0 0.0
        %237 = vmatprep.subr.mxu0 0.0
        %238 = vmatpush1.msra.mxu0 0.0
        %239 = vmatprep.subr.mxu0 0.0
        %240 = vmatpush1.msra.mxu0 0.0
        %241 = vmatprep.subr.mxu0 0.0
        %242 = vmatpush1.msra.mxu0 0.0
        %243 = vmatprep.subr.mxu0 0.0
        %244 = vmatpush1.msra.mxu0 0.0
        %245 = vmatprep.subr.mxu0 0.0
        %246 = vmatpush1.msra.mxu0 0.0
        %247 = vmatprep.subr.mxu0 0.0
        %248 = vmatpush1.msra.mxu0 0.0
        %249 = vmatprep.subr.mxu0 0.0
        %250 = vmatpush1.msra.mxu0 0.0
        %251 = vmatprep.subr.mxu0 0.0
        %252 = vmatpush1.msra.mxu0 0.0
        %253 = vmatprep.subr.mxu0 0.0
        %254 = vmatpush1.msra.mxu0 0.0
        %255 = vmatprep.subr.mxu0 0.0
        %256 = vmatpush1.msra.mxu0 0.0
        %257 = vmatprep.subr.mxu0 0.0
        %258 = vmatpush1.msra.mxu0 0.0
        %259 = vmatprep.subr.mxu0 0.0
        %260 = vmatpush1.msra.mxu0 0.0
        %261 = vmatprep.subr.mxu0 0.0
        %262 = vmatpush1.msra.mxu0 0.0
        %263 = vmatprep.subr.mxu0 0.0
        %264 = vmatpush1.msra.mxu0 0.0
        %265 = vmatprep.subr.mxu0 0.0
        %266 = vmatpush1.msra.mxu0 0.0
        %267 = vmatprep.subr.mxu0 0.0
        %268 = vmatpush1.msra.mxu0 0.0
        %269 = vmatprep.subr.mxu0 0.0
        %270 = vmatpush1.msra.mxu0 0.0
        %271 = vmatprep.subr.mxu0 0.0
        %272 = vmatpush1.msra.mxu0 0.0
        %273 = vmatprep.subr.mxu0 0.0
        %274 = vmatpush1.msra.mxu0 0.0
        %275 = vmatprep.subr.mxu0 0.0
        %276 = vmatpush1.msra.mxu0 0.0
        %277 = vmatprep.mubr.f32.mxu0 0.0
        %278 = vmatmul.mubr.f32.gmra.mrb[0].mxu0 %v207
        %v279 = vpop.f32.mrb[0].mxu0
        %v280 = vadd.f32 %v203, %v279
        %v281 = vpop.f32.mrb[0].mxu0
        %282 = vdwg.mxu0
        %v283 = vmax.f32 %v280, 0.0
        %v284 = vxor.u32 %v280, 2147483648
        %v285 = vmul.f32 %v284, 1.442695
        %v286 = vpow.pop %v285
        %v287 = vadd.f32 %v286, 1.0
        %v288 = vrcp.pop %v287
        %v289 = vmul.f32 1.0, %v288
        %v290 = vlaneseq
        %v291 = vshrl.u32 %v290, 7
        %v292 = vsub.s32 4, %v291
        %v293 = vrot.slane %v289, %v292
        %v294 = vmul.f32 %v283, %v293
        %v296 = vrot.slane %v196, 4
        %v298 = vadd.f32 %v294, %v296
        %299 = vst.msk [vmem:[%s174] sm:$0xf] %vm181, %v298
        %s300 = sand.u32 %s94, 1
        %s301 = scalar_lea.sflag [#allocation5], %s300
        %s302 = sand.u32 %s94, 1
        %s303 = smul.addr %s302, 4
        %s304 = scalar_lea.vmem [#allocation6], %s303
        // Predicated region
        $region37: #{tpu_custom_call.1} parent=31 // pred_check
          %p305 = pneg %p104
        $region38: #{tpu_custom_call.1} parent=31 // pred_check_branch
          %307 = sbr.rel (%p305) target = $region40
        $region39: #{tpu_custom_call.1} parent=31 // pred_region
          %s309 = ssub.s32 64, 64
          %310 = vsyncadd %s301, %s309
          %s311 = smul.addr %s18, 64
          %s312 = scalar_lea.hbm %s3, %s311
          %s314 = sshll.u32 %s304, 4
          %s315 = int_to_ptr.vmem [resolvable:$true] %s314
          %317 = dma.vmem_to_hbm [thread:$0]  %s315, 64, %s312, %s301
        $region40: #{tpu_custom_call.1} parent=31 // pred_fallthru
          _
      $region32: #{tpu_custom_call.1} parent=5 // pred_fallthru
        _
      %p318 = scmp.le.s32.totalorder 2, %s13
      // Predicated region
      $region41: #{tpu_custom_call.1} parent=5 // pred_check
        %p319 = pneg %p318
      $region42: #{tpu_custom_call.1} parent=5 // pred_check_branch
        %321 = sbr.rel (%p319) target = $region44
      $region43: #{tpu_custom_call.1} parent=5 // pred_region
        %s322 = ssub.s32 %s13, 2
        // Predicated region
        $region45: #{tpu_custom_call.1} parent=43 // pred_check
          %p323 = pneg %p110
        $region46: #{tpu_custom_call.1} parent=43 // pred_check_branch
          %325 = sbr.rel (%p323) target = $region48
        $region47: #{tpu_custom_call.1} parent=43 // pred_region
          %s326 = sand.u32 %s95, 1
          %s327 = scalar_lea.sflag [#allocation5], %s326
          %s328 = sand.u32 %s95, 1
          %s329 = smul.addr %s328, 4
          %s330 = scalar_lea.vmem [#allocation6], %s329
          %331 = dma.done %s327, 64
        $region48: #{tpu_custom_call.1} parent=43 // pred_fallthru
          _
      $region44: #{tpu_custom_call.1} parent=5 // pred_fallthru
        _
    $region6: #{tpu_custom_call.1} parent=1 // loop_footer
      %s17 = sadd.s32 1, %s13
    $region7: #{tpu_custom_call.1} parent=1 // loop_footer_branch
      %12 = sbr.rel target = $region3
    $region8: #{tpu_custom_call.1} parent=1 // loop_exit
      _
    %332 = vsyncpa [#allocation4], 1
    %s333 = scalar_lea.sflag [#allocation4], 1
    %334 = vsyncpa %s333, 1
    %335 = vsyncpa [#allocation5], 1
    %s336 = scalar_lea.sflag [#allocation5], 1
    %337 = vsyncpa %s336, 1

</llo_original>
